<compile_context>
chip_gen: v7x
topology: tpu7x:2x2x1
jax: 0.10.0
libtpu: 0.0.40
codegen_flags: <defaults>
</compile_context>

<pallas_src>
import jax
import jax.numpy as jnp
from jax.experimental import pallas as pl
from jax.experimental.pallas import tpu as pltpu


_TARGET_BLOCK_BYTES = 8 * 1024 * 1024   # ~8 MiB per block (in bytes, dtype-aware)
_VMEM_LIMIT_BYTES = 48 * 1024 * 1024    # 2 arrays x 2 buffers x 8 MiB = 32 MiB < 48 MiB
_MIN_SPLIT_BYTES = 1 * 1024 * 1024      # force >=2 grid steps above this (v7x megacore)


def _round_up(x: int, m: int) -> int:
    return ((x + m - 1) // m) * m


def _sparsify_kernel(sig_ref, adj_ref, out_ref):
    # sig_ref: SMEM (1,) f32 holding sigmoid(threshold) (precomputed in wrapper).
    # adj_ref / out_ref: one (b_tile, r_tile, C) block in VMEM.
    x = adj_ref[...]
    # Subtraction happens in the input dtype (bf16 stays bf16); fine for a
    # relu-threshold, documented as a minor deviation from an all-f32 reference.
    sig = sig_ref[0].astype(x.dtype)
    out_ref[...] = jnp.maximum(x - sig, 0)


@jax.jit
def sparsify(adjacency_matrix: jax.Array, threshold: jax.Array) -> jax.Array:
    """relu(adjacency_matrix - sigmoid(threshold)) as a streaming Pallas kernel.

    adjacency_matrix: (..., R, C) float32 or bfloat16 (typically (B, N, N))
    threshold:        (1,) float32 learnable scalar parameter
    """
    orig_shape = adjacency_matrix.shape
    assert adjacency_matrix.ndim >= 2, "adjacency_matrix must be at least 2-D"
    dtype = adjacency_matrix.dtype
    R, C = orig_shape[-2], orig_shape[-1]
    B = 1
    for d in orig_shape[:-2]:
        B *= d
    # Collapsing leading (batch) dims does not touch the tiled last-two-dims
    # layout, so this reshape is free on TPU.
    x = adjacency_matrix.reshape(B, R, C)

    # Scalar sigmoid once in the wrapper (single scalar op, fused by XLA).
    sig = jax.nn.sigmoid(threshold.astype(jnp.float32).reshape(-1)[:1])

    itemsize = jnp.dtype(dtype).itemsize
    r_pad = _round_up(R, 8)
    c_pad = _round_up(C, 128)
    face_bytes = r_pad * c_pad * itemsize        # padded footprint of one (R, C) face
    total_bytes = B * face_bytes

    # Pick the largest block that stays near the 8 MiB target (dtype-aware):
    # prefer batching whole faces; only tile rows when a single face is too big.
    if face_bytes <= _TARGET_BLOCK_BYTES:
        b_tile = max(1, min(B, _TARGET_BLOCK_BYTES // face_bytes))
        r_tile = R
    else:
        b_tile = 1
        r_tile = max(8, (_TARGET_BLOCK_BYTES // (c_pad * itemsize)) // 8 * 8)
        r_tile = min(r_tile, R)                  # if clamped, r_tile == R (full dim)

    # Guarantee >=2 grid steps for non-trivial sizes so the "parallel" axes can
    # shard across v7x's two TensorCores; no-op on single-TC v5e/v6e.
    if pl.cdiv(B, b_tile) * pl.cdiv(R, r_tile) == 1 and total_bytes >= _MIN_SPLIT_BYTES:
        if B >= 2:
            b_tile = pl.cdiv(B, 2)
        elif R >= 16:
            r_tile = _round_up(pl.cdiv(R, 2), 8)

    grid = (pl.cdiv(B, b_tile), pl.cdiv(R, r_tile))
    block = (b_tile, r_tile, C)                  # last dim full -> always a legal block

    cost = pl.CostEstimate(
        flops=2 * B * R * C,                     # one sub + one max per element
        transcendentals=0,
        bytes_accessed=2 * total_bytes,          # pure read + write of the (padded) layout
    )

    out = pl.pallas_call(
        _sparsify_kernel,
        out_shape=jax.ShapeDtypeStruct((B, R, C), dtype),
        grid=grid,
        in_specs=[
            # sigmoid(threshold): scalar, resident in SMEM for every grid step.
            pl.BlockSpec(memory_space=pltpu.MemorySpace.SMEM),
            pl.BlockSpec(block, lambda b, r: (b, r, 0)),
        ],
        out_specs=pl.BlockSpec(block, lambda b, r: (b, r, 0)),
        compiler_params=pltpu.CompilerParams(
            dimension_semantics=("parallel", "parallel"),
            vmem_limit_bytes=_VMEM_LIMIT_BYTES,
        ),
        cost_estimate=cost,
    )(sig, x)

    # Restoring the leading dims is again a layout-free reshape.
    return out.reshape(orig_shape)


if __name__ == "__main__":
    key = jax.random.PRNGKey(0)
    k_small, k_big = jax.random.split(key)

    # Parameter init identical to the PyTorch module: torch.full((1,), -6.0)
    threshold = jnp.full((1,), -6.0, dtype=jnp.float32)

    # Small example consistent with the module: batch of 2 adjacency matrices
    # over 16 nodes (single-block path, lane padding inherent to the layout).
    B, N = 2, 16
    adjacency = jax.random.uniform(k_small, (B, N, N), dtype=jnp.float32)
    out = jax.block_until_ready(sparsify(adjacency, threshold))
    ref = jnp.maximum(adjacency - jax.nn.sigmoid(threshold)[0], 0.0)
    assert out.shape == adjacency.shape and out.dtype == adjacency.dtype
    assert jnp.allclose(out, ref, atol=1e-6), "mismatch vs reference (small)"

    # bfloat16 path (2-byte dtype, subtraction done in bf16 inside the kernel).
    adjacency_bf16 = adjacency.astype(jnp.bfloat16)
    out_bf16 = jax.block_until_ready(sparsify(adjacency_bf16, threshold))
    assert out_bf16.dtype == jnp.bfloat16
    assert jnp.allclose(out_bf16.astype(jnp.float32), ref, atol=2e-2), \
        "mismatch vs reference (bf16)"

    # Larger, non-128-aligned case exercising the multi-step grid, ragged
    # lane tail, and the >=2-step split for v7x (no wrapper pad/slice passes).
    B2, N2 = 2, 530
    adjacency2 = jax.random.uniform(k_big, (B2, N2, N2), dtype=jnp.float32)
    out2 = jax.block_until_ready(sparsify(adjacency2, threshold))
    ref2 = jnp.maximum(adjacency2 - jax.nn.sigmoid(threshold)[0], 0.0)
    assert out2.shape == adjacency2.shape
    assert jnp.allclose(out2, ref2, atol=1e-6), "mismatch vs reference (tiled)"

    print("KERNEL_OK")
</pallas_src>

<mosaic_0001>
module attributes {stable_mosaic.version = 11 : i64} {
  func.func @_sparsify_kernel(%arg0: i32, %arg1: i32, %arg2: memref<1xf32, #tpu.memory_space<smem>>, %arg3: memref<2x16x16xf32, #tpu.memory_space<vmem>>, %arg4: memref<2x16x16xf32, #tpu.memory_space<vmem>>) attributes {dimension_semantics = [#tpu.dimension_semantics<parallel>, #tpu.dimension_semantics<parallel>], iteration_bounds = array<i64: 1, 1>, scalar_prefetch = 0 : i64, scratch_operands = 0 : i64, tpu.core_type = #tpu.core_type<tc>, window_params = [{transform_indices = @transform_0, window_bounds = array<i64: 1>}, {transform_indices = @transform_1, window_bounds = array<i64: 2, 16, 16>}, {transform_indices = @transform_2, window_bounds = array<i64: 2, 16, 16>}]} {
    %c0 = arith.constant 0 : index
    %c0_0 = arith.constant 0 : index
    %c0_1 = arith.constant 0 : index
    %0 = vector.load %arg3[%c0, %c0_0, %c0_1] : memref<2x16x16xf32, #tpu.memory_space<vmem>>, vector<2x16x16xf32>
    %c0_2 = arith.constant 0 : index
    %1 = memref.load %arg2[%c0_2] : memref<1xf32, #tpu.memory_space<smem>>
    %2 = vector.broadcast %1 : f32 to vector<2x16x16xf32>
    %3 = arith.subf %0, %2 : vector<2x16x16xf32>
    %cst = arith.constant 0.000000e+00 : f32
    %4 = vector.broadcast %cst : f32 to vector<2x16x16xf32>
    %5 = arith.maximumf %3, %4 : vector<2x16x16xf32>
    %c0_3 = arith.constant 0 : index
    %c0_4 = arith.constant 0 : index
    %c0_5 = arith.constant 0 : index
    %6 = vector.load %arg4[%c0_3, %c0_4, %c0_5] : memref<2x16x16xf32, #tpu.memory_space<vmem>>, vector<2x16x16xf32>
    tpu.vector_store %arg4[%c0_3, %c0_4, %c0_5], %5 {strides = array<i32>} : memref<2x16x16xf32, #tpu.memory_space<vmem>>, vector<2x16x16xf32>,
    return
  }
  func.func @transform_0(%arg0: i32, %arg1: i32) -> i32 {
    %c0_i32 = arith.constant 0 : i32
    %c0_i32_0 = arith.constant 0 : i32
    return %c0_i32 : i32
  }
  func.func @transform_1(%arg0: i32, %arg1: i32) -> (i32, i32, i32) {
    %c0_i32 = arith.constant 0 : i32
    %c0_i32_0 = arith.constant 0 : i32
    return %arg0, %arg1, %c0_i32 : i32, i32, i32
  }
  func.func @transform_2(%arg0: i32, %arg1: i32) -> (i32, i32, i32) {
    %c0_i32 = arith.constant 0 : i32
    %c0_i32_0 = arith.constant 0 : i32
    return %arg0, %arg1, %c0_i32 : i32, i32, i32
  }
}

</mosaic_0001>

<llo_original>
// kernel: sparsify.1
$region0: #{sparsify.1}
  #allocation0 [shape = 'u32[]', space=smem, size = 0x4, offset = 0x4, fixed_abs, tag = 'smem constant byte address 0x4 - core index']
  #allocation1 [shape = 'u32[144,128]{1,0:T(1,128)}', space=vmem, size = 0x12000, scoped, tag = 'internal scratch']
  #allocation2 [shape = 'f32[1]{0:T(128)S(6)}', space=smem, size = 0x200, scoped, tag = 'scoped memory for sparsify.1']
  %s0 = inlined_call_operand.<no memory space> [shape: f32[1], index: 0, kind: input, shape index: {}]
  %s1 = inlined_call_operand.hbm [shape: f32[2,16,16], index: 1, kind: input, shape index: {}]
  %s2 = inlined_call_operand.hbm [shape: f32[2,16,16], index: 2, kind: output, shape index: {}]
  %s3 = sld [smem:[#allocation0]]
  $region22: #{sparsify.1} parent=0
    _
  %s5 = ssub.s32 1, %s3
  %s6 = scalar_select 0, %s5, %s3
  %7 = sst [smem:[#allocation2]] %s0
  $region1: #{sparsify.1} parent=0
    #allocation3 [shape = 'u8[16384]{0}', space=vmem, size = 0x4000, scoped, tag = 'input window, operand 1, single buffered']
    #allocation4 [shape = 's32[1]{0}', space=sflag, size = 0x4, scoped, tag = 'scoped memory for sparsify.1']
    #allocation5 [shape = 's32[1]{0}', space=sflag, size = 0x4, scoped, tag = 'scoped memory for sparsify.1']
    #allocation6 [shape = 'u8[16384]{0}', space=vmem, size = 0x4000, scoped, tag = 'output window, operand 0, single buffered']
    %8 = vsyncpa [#allocation4], 0
    %9 = vsyncpa [#allocation5], 0
    // Predicated region
    $region2: #{sparsify.1} parent=1 // pred_check
      _
    $region3: #{sparsify.1} parent=1 // pred_check_branch
      %11 = sbr.rel (0) target = $region5
    $region4: #{sparsify.1} parent=1 // pred_region
      _
    $region5: #{sparsify.1} parent=1 // pred_fallthru
      _
    // Predicated region
    $region6: #{sparsify.1} parent=1 // pred_check
      _
    $region7: #{sparsify.1} parent=1 // pred_check_branch
      %13 = sbr.rel (0) target = $region9
    $region8: #{sparsify.1} parent=1 // pred_region
      %s15 = ssub.s32 512, 512
      %16 = vsyncadd [#allocation4], %s15
      %s17 = sshll.u32 [#allocation3], 4
      %s18 = int_to_ptr.vmem [resolvable:$true] %s17
      %23 = dma.hbm_to_vmem [thread:$0]  %s1, 512, %s18, [#allocation4], 128, 128, 8
    $region9: #{sparsify.1} parent=1 // pred_fallthru
      _
    // Predicated region
    $region10: #{sparsify.1} parent=1 // pred_check
      _
    $region11: #{sparsify.1} parent=1 // pred_check_branch
      %25 = sbr.rel (0) target = $region13
    $region12: #{sparsify.1} parent=1 // pred_region
      %26 = dma.done [#allocation4], 512
    $region13: #{sparsify.1} parent=1 // pred_fallthru
      _
    %v27 = vld [vmem:[#allocation3] sm:$0xff]
    %v28 = vld [vmem:[#allocation3 + $0x8] sm:$0xff]
    %v29 = vld [vmem:[#allocation3 + $0x10] sm:$0xff]
    %v30 = vld [vmem:[#allocation3 + $0x18] sm:$0xff]
    %s31 = sld [smem:[#allocation2]]
    %v32 = vstv %s31
    %v33 = vsub.f32 %v27, %v32
    %v34 = vsub.f32 %v28, %v32
    %v35 = vsub.f32 %v29, %v32
    %v36 = vsub.f32 %v30, %v32
    %v37 = vmax.f32 %v33, 0.0
    %v38 = vmax.f32 %v34, 0.0
    %v39 = vmax.f32 %v35, 0.0
    %v40 = vmax.f32 %v36, 0.0
    %vm41 = vcmask 130048
    %42 = vst.msk [vmem:[#allocation6] sm:$0xff] %vm41, %v37
    %43 = vst.msk [vmem:[#allocation6 + $0x8] sm:$0xff] %vm41, %v38
    %44 = vst.msk [vmem:[#allocation6 + $0x10] sm:$0xff] %vm41, %v39
    %45 = vst.msk [vmem:[#allocation6 + $0x18] sm:$0xff] %vm41, %v40
    // Predicated region
    $region14: #{sparsify.1} parent=1 // pred_check
      _
    $region15: #{sparsify.1} parent=1 // pred_check_branch
      %47 = sbr.rel (0) target = $region17
    $region16: #{sparsify.1} parent=1 // pred_region
      %s49 = ssub.s32 512, 512
      %50 = vsyncadd [#allocation5], %s49
      %s51 = sshll.u32 [#allocation6], 4
      %s52 = int_to_ptr.vmem [resolvable:$true] %s51
      %57 = dma.vmem_to_hbm [thread:$0]  %s52, 512, %s2, [#allocation5], 128, 128, 8
    $region17: #{sparsify.1} parent=1 // pred_fallthru
      _
    // Predicated region
    $region18: #{sparsify.1} parent=1 // pred_check
      _
    $region19: #{sparsify.1} parent=1 // pred_check_branch
      %59 = sbr.rel (0) target = $region21
    $region20: #{sparsify.1} parent=1 // pred_region
      %60 = dma.done [#allocation5], 512
    $region21: #{sparsify.1} parent=1 // pred_fallthru
      _
    %61 = vsyncpa [#allocation4], 1
    %62 = vsyncpa [#allocation5], 1

</llo_original>
